<compile_context>
chip_gen: v6e
topology: v6e:2x2x1
jax: 0.10.0
libtpu: 0.0.40
codegen_flags: <defaults>
</compile_context>

<pallas_src>
import functools
import math

import jax
import jax.numpy as jnp
from jax.experimental import pallas as pl
from jax.experimental.pallas import tpu as pltpu

# ----------------------------- config ---------------------------------------
B = 2            # batch
S = 8            # sequence length
H = 32           # hidden_size
I = 128          # intermediate_size (multiple of 128 -> lane-dense output)

INV_SQRT2 = 1.0 / math.sqrt(2.0)
SQRT_2_OVER_PI = math.sqrt(2.0 / math.pi)


# ----------------------------- kernel ---------------------------------------
def _bert_intermediate_kernel(x_ref, w_ref, b_ref, o_ref, acc_ref, *,
                              approximate_gelu: bool):
    # x_ref : (tm, tk)  activation tile
    # w_ref : (tk, tn)  weight tile (pre-transposed: H_in x H_out)
    # b_ref : (1, tn)   bias tile
    # o_ref : (tm, tn)  output tile (lane-dense, multiple of 128)
    # acc_ref: (tm, tn) f32 accumulator scratch, resident across the K axis
    k = pl.program_id(2)

    @pl.when(k == 0)
    def _init():
        acc_ref[...] = jnp.zeros_like(acc_ref)

    acc_ref[...] += jnp.dot(x_ref[...], w_ref[...],
                            preferred_element_type=jnp.float32)

    @pl.when(k == pl.num_programs(2) - 1)
    def _finalize():
        h = acc_ref[...] + b_ref[...].astype(jnp.float32)
        if approximate_gelu:
            # tanh form -> EUP slot (cheap), ~1e-3 off the exact-erf reference.
            g = 0.5 * h * (1.0 + jnp.tanh(SQRT_2_OVER_PI
                                          * (h + 0.044715 * h * h * h)))
        else:
            # Exact GELU: x * 0.5 * (1 + erf(x / sqrt(2)))  (matches PyTorch).
            g = 0.5 * h * (1.0 + jax.lax.erf(h * INV_SQRT2))
        o_ref[...] = g.astype(o_ref.dtype)


# ----------------------------- tiling helpers --------------------------------
def _largest_aligned_divisor(dim, cap, align):
    """Largest divisor of `dim` that is <= cap and a multiple of `align`;
    falls back to the full dim (untiled) if none exists."""
    if dim <= cap:
        return dim
    t = (cap // align) * align
    while t >= align:
        if dim % t == 0:
            return t
        t -= align
    return dim


# ----------------------------- wrapper ---------------------------------------
def bert_intermediate(hidden_states, params, *, approximate_gelu=False,
                      compute_dtype=None):
    """hidden_states: (B, S, H) -> (B, S, I)."""
    Bx, Sx, Hx = hidden_states.shape
    wt = params["wt"]
    bias = params["b"]
    Iv = wt.shape[1]

    N = Bx * Sx
    x2d = hidden_states.reshape(N, Hx)

    if compute_dtype is not None:          # e.g. jnp.bfloat16 on v6e/v7x at scale
        x2d = x2d.astype(compute_dtype)
        wt = wt.astype(compute_dtype)

    # Tile sizes: sublane axis multiples of 8, lane axes multiples of 128
    # (or the full dim when it is smaller / indivisible).
    tm = _largest_aligned_divisor(N, 256, 8)
    tk = _largest_aligned_divisor(Hx, 512, 128) if Hx >= 128 else Hx
    tn = _largest_aligned_divisor(Iv, 512, 128)

    grid = (N // tm, Iv // tn, Hx // tk)

    # VMEM budget: double-buffered inputs/outputs + accumulator, with margin;
    # capped at 64 MiB so tiles chosen for v5e/v6e never exceed v7x's VMEM.
    in_item = jnp.dtype(x2d.dtype).itemsize
    needed = (2 * (tm * tk + tk * tn + tn) * in_item   # double-buffered inputs
              + 2 * tm * tn * 4                        # double-buffered output
              + tm * tn * 4)                           # accumulator scratch
    vmem_limit = int(min(max(4 * needed, 16 * 2 ** 20), 64 * 2 ** 20))

    cost = pl.CostEstimate(
        flops=2 * N * Hx * Iv,
        transcendentals=N * Iv,
        bytes_accessed=(N * Hx + Hx * Iv + Iv) * in_item + N * Iv * 4,
    )

    grid_spec = pltpu.PrefetchScalarGridSpec(
        num_scalar_prefetch=0,
        grid=grid,
        in_specs=[
            pl.BlockSpec((tm, tk), lambda i, j, k: (i, k)),   # activations
            pl.BlockSpec((tk, tn), lambda i, j, k: (k, j)),   # W^T
            pl.BlockSpec((1, tn), lambda i, j, k: (0, j)),    # bias
        ],
        out_specs=pl.BlockSpec((tm, tn), lambda i, j, k: (i, j)),
        scratch_shapes=[pltpu.VMEM((tm, tn), jnp.float32)],
    )

    out2d = pl.pallas_call(
        functools.partial(_bert_intermediate_kernel,
                          approximate_gelu=approximate_gelu),
        out_shape=jax.ShapeDtypeStruct((N, Iv), jnp.float32),
        grid_spec=grid_spec,
        compiler_params=pltpu.CompilerParams(
            dimension_semantics=("parallel", "parallel", "arbitrary"),
            vmem_limit_bytes=vmem_limit,
        ),
        cost_estimate=cost,
    )(x2d, wt, bias)

    return out2d.reshape(Bx, Sx, Iv)


# ----------------------------- param init ------------------------------------
def init_params(key):
    k_w, k_b = jax.random.split(key)
    std = 0.02
    return {
        # stored already transposed: (H_in, H_out), so the kernel does x @ W
        "wt": std * jax.random.normal(k_w, (H, I), jnp.float32),
        "b": std * jax.random.normal(k_b, (1, I), jnp.float32),
    }


# ----------------------------- reference -------------------------------------
def reference(hidden_states, params):
    h = jnp.einsum("bsh,hi->bsi", hidden_states, params["wt"]) + params["b"][0]
    return h * 0.5 * (1.0 + jax.lax.erf(h * INV_SQRT2))


# ----------------------------- main ------------------------------------------
if __name__ == "__main__":
    key = jax.random.PRNGKey(0)
    k_x, k_p = jax.random.split(key)

    x = jax.random.normal(k_x, (B, S, H), jnp.float32)
    params = init_params(k_p)

    out = bert_intermediate(x, params)
    out = jax.block_until_ready(out)

    assert out.shape == (B, S, I)
    assert bool(jnp.all(jnp.isfinite(out)))

    ref = reference(x, params)
    assert bool(jnp.allclose(out, ref, atol=1e-5, rtol=1e-5))

    print("KERNEL_OK")
</pallas_src>

<mosaic_0001>
module attributes {stable_mosaic.version = 11 : i64} {
  func.func @_bert_intermediate_kernel(%arg0: i32, %arg1: i32, %arg2: i32, %arg3: memref<16x32xf32, #tpu.memory_space<vmem>>, %arg4: memref<32x128xf32, #tpu.memory_space<vmem>>, %arg5: memref<1x128xf32, #tpu.memory_space<vmem>>, %arg6: memref<16x128xf32, #tpu.memory_space<vmem>>, %arg7: memref<16x128xf32, #tpu.memory_space<vmem>>) attributes {dimension_semantics = [#tpu.dimension_semantics<parallel>, #tpu.dimension_semantics<parallel>, #tpu.dimension_semantics<arbitrary>], iteration_bounds = array<i64: 1, 1, 1>, scalar_prefetch = 0 : i64, scratch_operands = 1 : i64, tpu.core_type = #tpu.core_type<tc>, window_params = [{transform_indices = @transform_0, window_bounds = array<i64: 16, 32>}, {transform_indices = @transform_1, window_bounds = array<i64: 32, 128>}, {transform_indices = @transform_2, window_bounds = array<i64: 1, 128>}, {transform_indices = @transform_3, window_bounds = array<i64: 16, 128>}]} {
    %c0_i32 = arith.constant 0 : i32
    %0 = arith.cmpi eq, %arg2, %c0_i32 : i32
    %1 = arith.extui %0 : i1 to i32
    %c0_i32_0 = arith.constant 0 : i32
    %2 = arith.cmpi ne, %1, %c0_i32_0 : i32
    scf.if %2 {
      %cst_10 = arith.constant 0.000000e+00 : f32
      %12 = vector.broadcast %cst_10 : f32 to vector<16x128xf32>
      %c0_11 = arith.constant 0 : index
      %c0_12 = arith.constant 0 : index
      %13 = vector.load %arg7[%c0_11, %c0_12] : memref<16x128xf32, #tpu.memory_space<vmem>>, vector<16x128xf32>
      tpu.vector_store %arg7[%c0_11, %c0_12], %12 {strides = array<i32>} : memref<16x128xf32, #tpu.memory_space<vmem>>, vector<16x128xf32>,
    } else {
    }
    %c0 = arith.constant 0 : index
    %c0_1 = arith.constant 0 : index
    %3 = vector.load %arg7[%c0, %c0_1] : memref<16x128xf32, #tpu.memory_space<vmem>>, vector<16x128xf32>
    %c0_2 = arith.constant 0 : index
    %c0_3 = arith.constant 0 : index
    %4 = vector.load %arg3[%c0_2, %c0_3] : memref<16x32xf32, #tpu.memory_space<vmem>>, vector<16x32xf32>
    %c0_4 = arith.constant 0 : index
    %c0_5 = arith.constant 0 : index
    %5 = vector.load %arg4[%c0_4, %c0_5] : memref<32x128xf32, #tpu.memory_space<vmem>>, vector<32x128xf32>
    %cst = arith.constant dense<0.000000e+00> : vector<16x128xf32>
    %6 = tpu.matmul %4, %5, %cst {dimension_numbers = #tpu.dot_dimension_numbers<[1], [0], [0], [1], [0, 0, 1, 1], [], []>} : vector<16x32xf32>, vector<32x128xf32>, vector<16x128xf32> -> vector<16x128xf32>
    %7 = arith.addf %3, %6 : vector<16x128xf32>
    %c0_6 = arith.constant 0 : index
    %c0_7 = arith.constant 0 : index
    %8 = vector.load %arg7[%c0_6, %c0_7] : memref<16x128xf32, #tpu.memory_space<vmem>>, vector<16x128xf32>
    tpu.vector_store %arg7[%c0_6, %c0_7], %7 {strides = array<i32>} : memref<16x128xf32, #tpu.memory_space<vmem>>, vector<16x128xf32>,
    %c0_i32_8 = arith.constant 0 : i32
    %9 = arith.cmpi eq, %arg2, %c0_i32_8 : i32
    %10 = arith.extui %9 : i1 to i32
    %c0_i32_9 = arith.constant 0 : i32
    %11 = arith.cmpi ne, %10, %c0_i32_9 : i32
    scf.if %11 {
      %c0_10 = arith.constant 0 : index
      %c0_11 = arith.constant 0 : index
      %12 = vector.load %arg7[%c0_10, %c0_11] : memref<16x128xf32, #tpu.memory_space<vmem>>, vector<16x128xf32>
      %c0_12 = arith.constant 0 : index
      %c0_13 = arith.constant 0 : index
      %13 = vector.load %arg5[%c0_12, %c0_13] : memref<1x128xf32, #tpu.memory_space<vmem>>, vector<1x128xf32>
      %14 = vector.broadcast %13 : vector<1x128xf32> to vector<16x128xf32>
      %15 = arith.addf %12, %14 : vector<16x128xf32>
      %cst_14 = arith.constant 5.000000e-01 : f32
      %16 = vector.broadcast %cst_14 : f32 to vector<16x128xf32>
      %17 = arith.mulf %16, %15 : vector<16x128xf32>
      %cst_15 = arith.constant 0.707106769 : f32
      %18 = vector.broadcast %cst_15 : f32 to vector<16x128xf32>
      %19 = arith.mulf %15, %18 : vector<16x128xf32>
      %20 = math.erf %19 : vector<16x128xf32>
      %cst_16 = arith.constant 1.000000e+00 : f32
      %21 = vector.broadcast %cst_16 : f32 to vector<16x128xf32>
      %22 = arith.addf %21, %20 : vector<16x128xf32>
      %23 = arith.mulf %17, %22 : vector<16x128xf32>
      %c0_17 = arith.constant 0 : index
      %c0_18 = arith.constant 0 : index
      %24 = vector.load %arg6[%c0_17, %c0_18] : memref<16x128xf32, #tpu.memory_space<vmem>>, vector<16x128xf32>
      tpu.vector_store %arg6[%c0_17, %c0_18], %23 {strides = array<i32>} : memref<16x128xf32, #tpu.memory_space<vmem>>, vector<16x128xf32>,
    } else {
    }
    return
  }
  func.func @transform_0(%arg0: i32, %arg1: i32, %arg2: i32) -> (i32, i32) {
    %c0_i32 = arith.constant 0 : i32
    return %arg0, %arg2 : i32, i32
  }
  func.func @transform_1(%arg0: i32, %arg1: i32, %arg2: i32) -> (i32, i32) {
    %c0_i32 = arith.constant 0 : i32
    return %arg2, %arg1 : i32, i32
  }
  func.func @transform_2(%arg0: i32, %arg1: i32, %arg2: i32) -> (i32, i32) {
    %c0_i32 = arith.constant 0 : i32
    %c0_i32_0 = arith.constant 0 : i32
    return %c0_i32, %arg1 : i32, i32
  }
  func.func @transform_3(%arg0: i32, %arg1: i32, %arg2: i32) -> (i32, i32) {
    %c0_i32 = arith.constant 0 : i32
    return %arg0, %arg1 : i32, i32
  }
}

</mosaic_0001>

<llo_original>
// kernel: tpu_custom_call.1
$region0: #{tpu_custom_call.1}
  #allocation0 [shape = 'u32[]', space=smem, size = 0x4, offset = 0x4, fixed_abs, tag = 'smem constant byte address 0x4 - core index']
  #allocation1 [shape = 'u32[144,128]{1,0:T(1,128)}', space=vmem, size = 0x12000, scoped, tag = 'internal scratch']
  #allocation2 [shape = 'f32[16,128]{1,0:T(8,128)}', space=vmem, size = 0x2000, scoped, tag = 'scratch operand']
  %s0 = inlined_call_operand.hbm [shape: f32[16,32], index: 0, kind: input, shape index: {}]
  %s1 = inlined_call_operand.hbm [shape: f32[32,128], index: 1, kind: input, shape index: {}]
  %s2 = inlined_call_operand.vmem [shape: f32[1,128], index: 2, kind: input, shape index: {}]
  %s3 = inlined_call_operand.hbm [shape: f32[16,128], index: 3, kind: output, shape index: {}]
  %s4 = sld [smem:[#allocation0]]
  $region38: #{tpu_custom_call.1} parent=0
    _
  %s6 = ssub.s32 1, %s4
  %s7 = scalar_select 0, %s6, %s4
  $region1: #{tpu_custom_call.1} parent=0
    #allocation3 [shape = 'u8[8192]{0}', space=vmem, size = 0x2000, scoped, tag = 'input window, operand 0, single buffered']
    #allocation4 [shape = 's32[1]{0}', space=sflag, size = 0x4, scoped, tag = 'scoped memory for tpu_custom_call.1']
    #allocation5 [shape = 's32[1]{0}', space=sflag, size = 0x4, scoped, tag = 'scoped memory for tpu_custom_call.1']
    #allocation6 [shape = 'u8[16384]{0}', space=vmem, size = 0x4000, scoped, tag = 'input window, operand 1, single buffered']
    #allocation7 [shape = 's32[1]{0}', space=sflag, size = 0x4, scoped, tag = 'scoped memory for tpu_custom_call.1']
    #allocation8 [shape = 'u8[8192]{0}', space=vmem, size = 0x2000, scoped, tag = 'output window, operand 0, single buffered']
    %8 = vsyncpa [#allocation4], 0
    %9 = vsyncpa [#allocation7], 0
    %10 = vsyncpa [#allocation5], 0
    // Predicated region
    $region2: #{tpu_custom_call.1} parent=1 // pred_check
      _
    $region3: #{tpu_custom_call.1} parent=1 // pred_check_branch
      %12 = sbr.rel (0) target = $region5
    $region4: #{tpu_custom_call.1} parent=1 // pred_region
      %s14 = ssub.s32 256, 256
      %15 = vsyncadd [#allocation4], %s14
      %s16 = sshll.u32 [#allocation3], 4
      %s17 = int_to_ptr.vmem [resolvable:$true] %s16
      %22 = dma.hbm_to_vmem [thread:$0]  %s0, 256, %s17, [#allocation4], 128, 128, 8
    $region5: #{tpu_custom_call.1} parent=1 // pred_fallthru
      _
    // Predicated region
    $region6: #{tpu_custom_call.1} parent=1 // pred_check
      _
    $region7: #{tpu_custom_call.1} parent=1 // pred_check_branch
      %24 = sbr.rel (0) target = $region9
    $region8: #{tpu_custom_call.1} parent=1 // pred_region
      %s26 = ssub.s32 512, 512
      %27 = vsyncadd [#allocation7], %s26
      %s28 = sshll.u32 [#allocation6], 4
      %s29 = int_to_ptr.vmem [resolvable:$true] %s28
      %34 = dma.hbm_to_vmem [thread:$0]  %s1, 512, %s29, [#allocation7], 128, 128, 8
    $region9: #{tpu_custom_call.1} parent=1 // pred_fallthru
      _
    // Predicated region
    $region10: #{tpu_custom_call.1} parent=1 // pred_check
      _
    $region11: #{tpu_custom_call.1} parent=1 // pred_check_branch
      %36 = sbr.rel (0) target = $region13
    $region12: #{tpu_custom_call.1} parent=1 // pred_region
      _
    $region13: #{tpu_custom_call.1} parent=1 // pred_fallthru
      _
    // Predicated region
    $region14: #{tpu_custom_call.1} parent=1 // pred_check
      _
    $region15: #{tpu_custom_call.1} parent=1 // pred_check_branch
      %38 = sbr.rel (0) target = $region17
    $region16: #{tpu_custom_call.1} parent=1 // pred_region
      %39 = dma.done [#allocation4], 256
    $region17: #{tpu_custom_call.1} parent=1 // pred_fallthru
      _
    // Predicated region
    $region18: #{tpu_custom_call.1} parent=1 // pred_check
      _
    $region19: #{tpu_custom_call.1} parent=1 // pred_check_branch
      %41 = sbr.rel (0) target = $region21
    $region20: #{tpu_custom_call.1} parent=1 // pred_region
      %42 = dma.done [#allocation7], 512
    $region21: #{tpu_custom_call.1} parent=1 // pred_fallthru
      _
    %p43 = scmp.eq.s32.totalorder 0, 0
    // Predicated region
    $region22: #{tpu_custom_call.1} parent=1 // pred_check
      %p44 = pneg %p43
    $region23: #{tpu_custom_call.1} parent=1 // pred_check_branch
      %46 = sbr.rel (%p44) target = $region25
    $region24: #{tpu_custom_call.1} parent=1 // pred_region
      %47 = vst [vmem:[#allocation2] sm:$0xff] 0.0
      %48 = vst [vmem:[#allocation2 + $0x8] sm:$0xff] 0.0
    $region25: #{tpu_custom_call.1} parent=1 // pred_fallthru
      _
    %v49 = vld [vmem:[#allocation2] sm:$0xff]
    %v50 = vld [vmem:[#allocation2 + $0x8] sm:$0xff]
    %v51 = vld [vmem:[#allocation3] sm:$0xff]
    %v52 = vld [vmem:[#allocation3 + $0x8] sm:$0xff]
    %v53 = vld [vmem:[#allocation6] sm:$0xff]
    %v54 = vld [vmem:[#allocation6 + $0x8] sm:$0xff]
    %v55 = vld [vmem:[#allocation6 + $0x10] sm:$0xff]
    %v56 = vld [vmem:[#allocation6 + $0x18] sm:$0xff]
    %vm57 = vcmask 261120
    %v59 = vsel %vm57, %v51, 0
    %v62 = vsel %vm57, %v52, 0
    %64 = vmatprep.subr.mxu0 0.0
    %65 = vmatpush1.msra.mxu0 0.0
    %66 = vmatprep.subr.mxu0 0.0
    %67 = vmatpush1.msra.mxu0 0.0
    %68 = vmatprep.subr.mxu0 0.0
    %69 = vmatpush1.msra.mxu0 0.0
    %70 = vmatprep.subr.mxu0 0.0
    %71 = vmatpush1.msra.mxu0 0.0
    %72 = vmatprep.subr.mxu0 0.0
    %73 = vmatpush1.msra.mxu0 0.0
    %74 = vmatprep.subr.mxu0 0.0
    %75 = vmatpush1.msra.mxu0 0.0
    %76 = vmatprep.subr.mxu0 0.0
    %77 = vmatpush1.msra.mxu0 0.0
    %78 = vmatprep.subr.mxu0 0.0
    %79 = vmatpush1.msra.mxu0 0.0
    %80 = vmatprep.subr.mxu0 0.0
    %81 = vmatpush1.msra.mxu0 0.0
    %82 = vmatprep.subr.mxu0 0.0
    %83 = vmatpush1.msra.mxu0 0.0
    %84 = vmatprep.subr.mxu0 0.0
    %85 = vmatpush1.msra.mxu0 0.0
    %86 = vmatprep.subr.mxu0 0.0
    %87 = vmatpush1.msra.mxu0 0.0
    %88 = vmatprep.subr.mxu0 0.0
    %89 = vmatpush1.msra.mxu0 %v56
    %90 = vmatprep.subr.mxu0 0.0
    %91 = vmatpush1.msra.mxu0 %v55
    %92 = vmatprep.subr.mxu0 0.0
    %93 = vmatpush1.msra.mxu0 %v54
    %94 = vmatprep.subr.mxu0 0.0
    %95 = vmatpush1.msra.mxu0 %v53
    %96 = vmatprep.subr.mxu0 0.0
    %97 = vmatpush2.msra.mxu0 0.0
    %98 = vmatprep.subr.mxu0 0.0
    %99 = vmatpush2.msra.mxu0 0.0
    %100 = vmatprep.subr.mxu0 0.0
    %101 = vmatpush2.msra.mxu0 0.0
    %102 = vmatprep.subr.mxu0 0.0
    %103 = vmatpush2.msra.mxu0 0.0
    %104 = vmatprep.subr.mxu0 0.0
    %105 = vmatpush2.msra.mxu0 0.0
    %106 = vmatprep.subr.mxu0 0.0
    %107 = vmatpush2.msra.mxu0 0.0
    %108 = vmatprep.subr.mxu0 0.0
    %109 = vmatpush2.msra.mxu0 0.0
    %110 = vmatprep.subr.mxu0 0.0
    %111 = vmatpush2.msra.mxu0 0.0
    %112 = vmatprep.subr.mxu0 0.0
    %113 = vmatpush2.msra.mxu0 0.0
    %114 = vmatprep.subr.mxu0 0.0
    %115 = vmatpush2.msra.mxu0 0.0
    %116 = vmatprep.subr.mxu0 0.0
    %117 = vmatpush2.msra.mxu0 0.0
    %118 = vmatprep.subr.mxu0 0.0
    %119 = vmatpush2.msra.mxu0 0.0
    %120 = vmatprep.subr.mxu0 0.0
    %121 = vmatpush2.msra.mxu0 0.0
    %122 = vmatprep.subr.mxu0 0.0
    %123 = vmatpush2.msra.mxu0 0.0
    %124 = vmatprep.subr.mxu0 0.0
    %125 = vmatpush2.msra.mxu0 0.0
    %126 = vmatprep.subr.mxu0 0.0
    %127 = vmatpush2.msra.mxu0 0.0
    %128 = vmatprep.mubr.f32.mxu0 0.0
    %129 = vmatmul.mubr.f32.gmra.mxu0 %v59
    %v130 = vpop.f32.mrf.mxu0
    %v131 = vadd.f32 0.0, %v130
    %v132 = vpop.f32.mrf.mxu0
    %133 = vmatprep.mubr.f32.mxu0 0.0
    %134 = vmatmul.mubr.f32.gmra.mxu0 %v62
    %v135 = vpop.f32.mrf.mxu0
    %v136 = vadd.f32 0.0, %v135
    %v137 = vpop.f32.mrf.mxu0
    %138 = vdwg.mxu0
    %v139 = vadd.f32 %v49, %v131
    %v140 = vadd.f32 %v50, %v136
    %141 = vst [vmem:[#allocation2] sm:$0xff] %v139
    %142 = vst [vmem:[#allocation2 + $0x8] sm:$0xff] %v140
    // Predicated region
    $region26: #{tpu_custom_call.1} parent=1 // pred_check
      %p143 = pneg %p43
    $region27: #{tpu_custom_call.1} parent=1 // pred_check_branch
      %145 = sbr.rel (%p143) target = $region29
    $region28: #{tpu_custom_call.1} parent=1 // pred_region
      %v146 = vld [vmem:[#allocation2] sm:$0xff]
      %v147 = vld [vmem:[#allocation2 + $0x8] sm:$0xff]
      %v148 = vld [vmem:[%s2] sm:$0x1]
      %v150 = vlaneseq
      %v151 = vshrl.u32 %v150, 7
      %v152 = vsub.s32 0, %v151
      %v153 = vrot.slane %v148, %v152
      %v155 = vadd.f32 %v146, %v153
      %v156 = vadd.f32 %v147, %v153
      %v157 = vmul.f32 %v155, 0.5
      %v158 = vmul.f32 %v156, 0.5
      %v159 = vmul.f32 %v155, 0.70710677
      %v160 = vmul.f32 %v156, 0.70710677
      %v161 = verf.f32.pop %v159
      %v162 = verf.f32.pop %v160
      %v163 = vadd.f32 %v161, 1.0
      %v164 = vadd.f32 %v162, 1.0
      %v165 = vmul.f32 %v157, %v163
      %v166 = vmul.f32 %v158, %v164
      %167 = vst [vmem:[#allocation8] sm:$0xff] %v165
      %168 = vst [vmem:[#allocation8 + $0x8] sm:$0xff] %v166
    $region29: #{tpu_custom_call.1} parent=1 // pred_fallthru
      _
    // Predicated region
    $region30: #{tpu_custom_call.1} parent=1 // pred_check
      _
    $region31: #{tpu_custom_call.1} parent=1 // pred_check_branch
      %170 = sbr.rel (0) target = $region33
    $region32: #{tpu_custom_call.1} parent=1 // pred_region
      %s172 = ssub.s32 256, 256
      %173 = vsyncadd [#allocation5], %s172
      %s174 = sshll.u32 [#allocation8], 4
      %s175 = int_to_ptr.vmem [resolvable:$true] %s174
      %180 = dma.vmem_to_hbm [thread:$0]  %s175, 256, %s3, [#allocation5], 128, 128, 8
    $region33: #{tpu_custom_call.1} parent=1 // pred_fallthru
      _
    // Predicated region
    $region34: #{tpu_custom_call.1} parent=1 // pred_check
      _
    $region35: #{tpu_custom_call.1} parent=1 // pred_check_branch
      %182 = sbr.rel (0) target = $region37
    $region36: #{tpu_custom_call.1} parent=1 // pred_region
      %183 = dma.done [#allocation5], 256
    $region37: #{tpu_custom_call.1} parent=1 // pred_fallthru
      _
    %184 = vsyncpa [#allocation4], 1
    %185 = vsyncpa [#allocation7], 1
    %186 = vsyncpa [#allocation5], 1

</llo_original>
